<compile_context>
chip_gen: v6e
topology: v6e:2x2x1
jax: 0.10.0
libtpu: 0.0.40
codegen_flags: <defaults>
</compile_context>

<pallas_src>
import numpy as np
import jax
import jax.numpy as jnp
from jax.experimental import pallas as pl
from jax.experimental.pallas import tpu as pltpu

FACTOR = 8000.0  # self.factor in the PyTorch module


def _srfft_kernel(x_ref, m_ref, o_ref):
    # y = x @ M, where M = rfft -> mask -> irfft composed into one real
    # (dim, dim) operator.  One MXU matmul per batch tile.
    o_ref[...] = jnp.dot(
        x_ref[...], m_ref[...], preferred_element_type=jnp.float32
    ).astype(o_ref.dtype)


def _round_up(x, m):
    return ((x + m - 1) // m) * m


def _pick_tile_b(rows):
    """Batch-tile size: sublane-aligned, sized for pipeline depth.

    - tiny batches: one aligned tile (nothing to pipeline),
    - mid batches:  ~6 grid steps so DMA-in/out overlaps compute,
    - huge batches: 2048-row tiles to amortize per-grid-step overhead.
    """
    rounded = _round_up(max(rows, 1), 8)
    if rounded <= 256:
        return rounded
    if rounded >= 16384:
        return 2048
    return max(64, min(2048, _round_up(pl.cdiv(rounded, 6), 8)))


def make_sampling_rate_fft(dim, init_freq=16000, smooth=100.0):
    """Builds the forward fn + parameters (mirrors the module's __init__).

    r_masking / w_space are initialized exactly as in the PyTorch module and
    treated as static at call time (inference), so rfft -> mask -> irfft is
    composed once, in float64, into a single real (dim, dim) operator M.
    # TODO(synk): if r_masking is ever trained / updated at runtime, M and
    # n_keep_cap must be recomputed from the live parameter per call.
    """
    assert dim % 2 == 0, "even dim assumed (standard rfft/irfft round trip)"
    K = dim // 2 + 1

    r_masking = 1.0                                              # nn.Parameter([1.0])
    smooth_f = float(smooth)
    # rfftfreq(dim, 1/init_freq) = [0, 1, ..., dim//2] * init_freq / dim
    w_space = np.arange(K, dtype=np.float64) * (init_freq / dim)

    # Frequency mask (same clamp as the torch.min/torch.max composition).
    mask = np.clip(-(w_space - FACTOR * r_masking) / smooth_f, 0.0, 1.0)  # (K,)

    # Real-DFT bases and the composed operator, all in float64 on the host.
    n = np.arange(dim, dtype=np.float64)[:, None]                # (N, 1)
    k = np.arange(K, dtype=np.float64)[None, :]                  # (1, K)
    ang_f = 2.0 * np.pi * n * k / dim
    cos_f = np.cos(ang_f)                                        # rfft real basis  (N, K)
    sin_f = -np.sin(ang_f)                                       # rfft imag basis  (N, K)

    w_herm = np.where((k == 0) | (k == dim // 2), 1.0, 2.0)      # Hermitian weights (1, K)
    m_idx = np.arange(dim, dtype=np.float64)[None, :]            # (1, N)
    ang_i = 2.0 * np.pi * k.T * m_idx / dim                      # (K, N)
    cos_i = (w_herm.T * np.cos(ang_i)) / dim                     # irfft real basis (K, N)
    sin_i = -(w_herm.T * np.sin(ang_i)) / dim                    # irfft imag basis (K, N)

    M = jnp.asarray((cos_f * mask) @ cos_i + (sin_f * mask) @ sin_i,
                    dtype=jnp.float32)                           # (dim, dim)

    # torch slices the LEADING (batch) dim of the spectrum before irfft:
    # f_signal[:int(factor * r_masking)].  irfft is per-row, so the slice
    # commutes and is fused into the kernel's out_shape (static bound).
    n_keep_cap = int(FACTOR * r_masking)

    def forward(x):
        x = x.astype(jnp.float32)
        batch = x.shape[0]
        n_keep = min(batch, n_keep_cap)

        tile_b = _pick_tile_b(n_keep)
        grid = (pl.cdiv(n_keep, tile_b),)   # partial last block masked by Pallas

        # VMEM budget: double-buffered x/out tiles (+ M, counted double-
        # buffered as the worst case).  Only raise the scoped-VMEM limit when
        # the footprint would exceed v5e's 16 MiB default.
        tile_bytes = tile_b * dim * 4
        vmem_needed = 4 * tile_bytes + 2 * dim * dim * 4 + (2 << 20)
        cp_kwargs = dict(dimension_semantics=("parallel",))      # megacore on v7x
        if vmem_needed > (16 << 20):
            cp_kwargs["vmem_limit_bytes"] = int(min(vmem_needed, 96 << 20))
        # TODO(synk): for dim >= ~2048 on v7x the resident (dim, dim) f32 M no
        # longer fits the 32 MiB scoped VMEM; tile M over a K grid axis with an
        # f32 accumulator scratch (pl.when init/finalize, axis "arbitrary").

        def run(single_buffer_m):
            if single_buffer_m:
                # M's index_map is constant -> never re-fetched; a second
                # buffer is pure VMEM waste (matters when dim scales).
                m_spec = pl.BlockSpec((dim, dim), lambda i: (0, 0),
                                      pipeline_mode=pl.Buffered(1))
            else:
                m_spec = pl.BlockSpec((dim, dim), lambda i: (0, 0))
            return pl.pallas_call(
                _srfft_kernel,
                out_shape=jax.ShapeDtypeStruct((n_keep, dim), jnp.float32),
                grid=grid,
                in_specs=[
                    pl.BlockSpec((tile_b, dim), lambda i: (i, 0)),  # x batch tile
                    m_spec,                                         # M resident in VMEM
                ],
                out_specs=pl.BlockSpec((tile_b, dim), lambda i: (i, 0)),
                compiler_params=pltpu.CompilerParams(**cp_kwargs),
            )(x, M)

        try:
            return run(single_buffer_m=True)
        except Exception:
            # pipeline_mode=pl.Buffered(1) unsupported on this jax build:
            # fall back to default double-buffering of M (64 KiB at dim=128).
            return run(single_buffer_m=False)

    params = (jnp.asarray([r_masking], jnp.float32),
              jnp.asarray(w_space, jnp.float32))
    return forward, params


if __name__ == "__main__":
    DIM = 128          # signal length (FFT size)
    INIT_FREQ = 16000
    SMOOTH = 100.0

    forward, (r_masking, w_space) = make_sampling_rate_fft(DIM, INIT_FREQ, SMOOTH)

    def reference(x):
        # Pure-JAX reference: same math as the PyTorch forward.
        mask = jnp.clip(-(w_space - FACTOR * r_masking[0]) / SMOOTH, 0.0, 1.0)
        y = jnp.fft.irfft(jnp.fft.rfft(x, axis=-1) * mask, axis=-1)
        keep = min(x.shape[0], int(FACTOR * float(r_masking[0])))
        return y[:keep].astype(jnp.float32)

    key = jax.random.PRNGKey(0)
    # batch=8:   single aligned tile.
    # batch=83:  tile larger than the batch -> masked partial-store path.
    # batch=600: multi-step pipelined grid with a masked partial last block.
    for i, batch in enumerate((8, 83, 600)):
        x = jax.random.normal(jax.random.fold_in(key, i), (batch, DIM),
                              dtype=jnp.float32)
        y = jax.block_until_ready(forward(x))
        y_ref = reference(x)
        assert y.shape == y_ref.shape, (batch, y.shape, y_ref.shape)
        err = float(jnp.max(jnp.abs(y - y_ref)))
        assert jnp.allclose(y, y_ref, atol=2e-3, rtol=1e-3), (batch, err)

    print("KERNEL_OK")
</pallas_src>

<mosaic_0001>
module attributes {stable_mosaic.version = 11 : i64} {
  func.func @_srfft_kernel(%arg0: i32, %arg1: memref<8x128xf32, #tpu.memory_space<vmem>>, %arg2: memref<128x128xf32, #tpu.memory_space<vmem>>, %arg3: memref<8x128xf32, #tpu.memory_space<vmem>>) attributes {dimension_semantics = [#tpu.dimension_semantics<parallel>], iteration_bounds = array<i64: 1>, scalar_prefetch = 0 : i64, scratch_operands = 0 : i64, tpu.core_type = #tpu.core_type<tc>, window_params = [{transform_indices = @transform_0, window_bounds = array<i64: 8, 128>}, {pipeline_mode = #tpu.pipeline_mode<synchronous>, transform_indices = @transform_1, window_bounds = array<i64: 128, 128>}, {transform_indices = @transform_2, window_bounds = array<i64: 8, 128>}]} {
    %c0 = arith.constant 0 : index
    %c0_0 = arith.constant 0 : index
    %0 = vector.load %arg1[%c0, %c0_0] : memref<8x128xf32, #tpu.memory_space<vmem>>, vector<8x128xf32>
    %c0_1 = arith.constant 0 : index
    %c0_2 = arith.constant 0 : index
    %1 = vector.load %arg2[%c0_1, %c0_2] : memref<128x128xf32, #tpu.memory_space<vmem>>, vector<128x128xf32>
    %cst = arith.constant dense<0.000000e+00> : vector<8x128xf32>
    %2 = tpu.matmul %0, %1, %cst {dimension_numbers = #tpu.dot_dimension_numbers<[1], [0], [0], [1], [0, 0, 1, 1], [], []>} : vector<8x128xf32>, vector<128x128xf32>, vector<8x128xf32> -> vector<8x128xf32>
    %c0_3 = arith.constant 0 : index
    %c0_4 = arith.constant 0 : index
    %3 = vector.load %arg3[%c0_3, %c0_4] : memref<8x128xf32, #tpu.memory_space<vmem>>, vector<8x128xf32>
    tpu.vector_store %arg3[%c0_3, %c0_4], %2 {strides = array<i32>} : memref<8x128xf32, #tpu.memory_space<vmem>>, vector<8x128xf32>,
    return
  }
  func.func @transform_0(%arg0: i32) -> (i32, i32) {
    %c0_i32 = arith.constant 0 : i32
    %c0_i32_0 = arith.constant 0 : i32
    return %arg0, %c0_i32 : i32, i32
  }
  func.func @transform_1(%arg0: i32) -> (i32, i32) {
    %c0_i32 = arith.constant 0 : i32
    %c0_i32_0 = arith.constant 0 : i32
    %c0_i32_1 = arith.constant 0 : i32
    return %c0_i32, %c0_i32_0 : i32, i32
  }
  func.func @transform_2(%arg0: i32) -> (i32, i32) {
    %c0_i32 = arith.constant 0 : i32
    %c0_i32_0 = arith.constant 0 : i32
    return %arg0, %c0_i32 : i32, i32
  }
}

module attributes {stable_mosaic.version = 11 : i64} {
  func.func @_srfft_kernel(%arg0: i32, %arg1: memref<8x128xf32, #tpu.memory_space<vmem>>, %arg2: memref<128x128xf32, #tpu.memory_space<vmem>>, %arg3: memref<8x128xf32, #tpu.memory_space<vmem>>) attributes {dimension_semantics = [#tpu.dimension_semantics<parallel>], iteration_bounds = array<i64: 1>, scalar_prefetch = 0 : i64, scratch_operands = 0 : i64, tpu.core_type = #tpu.core_type<tc>, window_params = [{transform_indices = @transform_0, window_bounds = array<i64: 8, 128>}, {pipeline_mode = #tpu.pipeline_mode<synchronous>, transform_indices = @transform_1, window_bounds = array<i64: 128, 128>}, {transform_indices = @transform_2, window_bounds = array<i64: 8, 128>}]} {
    %c0 = arith.constant 0 : index
    %c0_0 = arith.constant 0 : index
    %0 = vector.load %arg1[%c0, %c0_0] : memref<8x128xf32, #tpu.memory_space<vmem>>, vector<8x128xf32>
    %c0_1 = arith.constant 0 : index
    %c0_2 = arith.constant 0 : index
    %1 = vector.load %arg2[%c0_1, %c0_2] : memref<128x128xf32, #tpu.memory_space<vmem>>, vector<128x128xf32>
    %cst = arith.constant dense<0.000000e+00> : vector<8x128xf32>
    %2 = tpu.matmul %0, %1, %cst {dimension_numbers = #tpu.dot_dimension_numbers<[1], [0], [0], [1], [0, 0, 1, 1], [], []>} : vector<8x128xf32>, vector<128x128xf32>, vector<8x128xf32> -> vector<8x128xf32>
    %c0_3 = arith.constant 0 : index
    %c0_4 = arith.constant 0 : index
    %3 = vector.load %arg3[%c0_3, %c0_4] : memref<8x128xf32, #tpu.memory_space<vmem>>, vector<8x128xf32>
    tpu.vector_store %arg3[%c0_3, %c0_4], %2 {strides = array<i32>} : memref<8x128xf32, #tpu.memory_space<vmem>>, vector<8x128xf32>,
    return
  }
  func.func @transform_0(%arg0: i32) -> (i32, i32) {
    %c0_i32 = arith.constant 0 : i32
    %c0_i32_0 = arith.constant 0 : i32
    return %arg0, %c0_i32 : i32, i32
  }
  func.func @transform_1(%arg0: i32) -> (i32, i32) {
    %c0_i32 = arith.constant 0 : i32
    %c0_i32_0 = arith.constant 0 : i32
    %c0_i32_1 = arith.constant 0 : i32
    return %c0_i32, %c0_i32_0 : i32, i32
  }
  func.func @transform_2(%arg0: i32) -> (i32, i32) {
    %c0_i32 = arith.constant 0 : i32
    %c0_i32_0 = arith.constant 0 : i32
    return %arg0, %c0_i32 : i32, i32
  }
}

</mosaic_0001>

<llo_original>
// kernel: tpu_custom_call.1
$region0: #{tpu_custom_call.1}
  #allocation0 [shape = 'u32[]', space=smem, size = 0x4, offset = 0x4, fixed_abs, tag = 'smem constant byte address 0x4 - core index']
  #allocation1 [shape = 'u32[144,128]{1,0:T(1,128)}', space=vmem, size = 0x12000, scoped, tag = 'internal scratch']
  %s0 = inlined_call_operand.hbm [shape: f32[8,128], index: 0, kind: input, shape index: {}]
  %s1 = inlined_call_operand.hbm [shape: f32[128,128], index: 1, kind: input, shape index: {}]
  %s2 = inlined_call_operand.hbm [shape: f32[8,128], index: 2, kind: output, shape index: {}]
  %s3 = sld [smem:[#allocation0]]
  $region26: #{tpu_custom_call.1} parent=0
    _
  %s5 = ssub.s32 1, %s3
  %s6 = scalar_select 0, %s5, %s3
  $region1: #{tpu_custom_call.1} parent=0
    #allocation2 [shape = 'u8[4096]{0}', space=vmem, size = 0x1000, scoped, tag = 'input window, operand 0, single buffered']
    #allocation3 [shape = 's32[1]{0}', space=sflag, size = 0x4, scoped, tag = 'scoped memory for tpu_custom_call.1']
    #allocation4 [shape = 's32[1]{0}', space=sflag, size = 0x4, scoped, tag = 'scoped memory for tpu_custom_call.1']
    #allocation5 [shape = 'u8[65536]{0}', space=vmem, size = 0x10000, scoped, tag = 'input window, operand 1, single buffered']
    #allocation6 [shape = 's32[1]{0}', space=sflag, size = 0x4, scoped, tag = 'scoped memory for tpu_custom_call.1']
    #allocation7 [shape = 'u8[4096]{0}', space=vmem, size = 0x1000, scoped, tag = 'output window, operand 0, single buffered']
    %7 = vsyncpa [#allocation3], 0
    %8 = vsyncpa [#allocation6], 0
    %9 = vsyncpa [#allocation4], 0
    // Predicated region
    $region2: #{tpu_custom_call.1} parent=1 // pred_check
      _
    $region3: #{tpu_custom_call.1} parent=1 // pred_check_branch
      %11 = sbr.rel (0) target = $region5
    $region4: #{tpu_custom_call.1} parent=1 // pred_region
      %s13 = ssub.s32 128, 128
      %14 = vsyncadd [#allocation3], %s13
      %s16 = sshll.u32 [#allocation2], 4
      %s17 = int_to_ptr.vmem [resolvable:$true] %s16
      %19 = dma.hbm_to_vmem [thread:$0]  %s0, 128, %s17, [#allocation3]
    $region5: #{tpu_custom_call.1} parent=1 // pred_fallthru
      _
    // Predicated region
    $region6: #{tpu_custom_call.1} parent=1 // pred_check
      _
    $region7: #{tpu_custom_call.1} parent=1 // pred_check_branch
      %21 = sbr.rel (0) target = $region9
    $region8: #{tpu_custom_call.1} parent=1 // pred_region
      %s23 = ssub.s32 2048, 2048
      %24 = vsyncadd [#allocation6], %s23
      %s25 = sshll.u32 [#allocation5], 4
      %s26 = int_to_ptr.vmem [resolvable:$true] %s25
      %31 = dma.hbm_to_vmem [thread:$0]  %s1, 2048, %s26, [#allocation6], 128, 128, 8
    $region9: #{tpu_custom_call.1} parent=1 // pred_fallthru
      _
    // Predicated region
    $region10: #{tpu_custom_call.1} parent=1 // pred_check
      _
    $region11: #{tpu_custom_call.1} parent=1 // pred_check_branch
      %33 = sbr.rel (0) target = $region13
    $region12: #{tpu_custom_call.1} parent=1 // pred_region
      %34 = dma.done [#allocation3], 128
    $region13: #{tpu_custom_call.1} parent=1 // pred_fallthru
      _
    // Predicated region
    $region14: #{tpu_custom_call.1} parent=1 // pred_check
      _
    $region15: #{tpu_custom_call.1} parent=1 // pred_check_branch
      %36 = sbr.rel (0) target = $region17
    $region16: #{tpu_custom_call.1} parent=1 // pred_region
      %37 = dma.done [#allocation6], 2048
    $region17: #{tpu_custom_call.1} parent=1 // pred_fallthru
      _
    %v38 = vld [vmem:[#allocation2] sm:$0xff]
    %v39 = vld [vmem:[#allocation5] sm:$0xff]
    %v40 = vld [vmem:[#allocation5 + $0x8] sm:$0xff]
    %v41 = vld [vmem:[#allocation5 + $0x10] sm:$0xff]
    %v42 = vld [vmem:[#allocation5 + $0x18] sm:$0xff]
    %v43 = vld [vmem:[#allocation5 + $0x20] sm:$0xff]
    %v44 = vld [vmem:[#allocation5 + $0x28] sm:$0xff]
    %v45 = vld [vmem:[#allocation5 + $0x30] sm:$0xff]
    %v46 = vld [vmem:[#allocation5 + $0x38] sm:$0xff]
    %v47 = vld [vmem:[#allocation5 + $0x40] sm:$0xff]
    %v48 = vld [vmem:[#allocation5 + $0x48] sm:$0xff]
    %v49 = vld [vmem:[#allocation5 + $0x50] sm:$0xff]
    %v50 = vld [vmem:[#allocation5 + $0x58] sm:$0xff]
    %v51 = vld [vmem:[#allocation5 + $0x60] sm:$0xff]
    %v52 = vld [vmem:[#allocation5 + $0x68] sm:$0xff]
    %v53 = vld [vmem:[#allocation5 + $0x70] sm:$0xff]
    %v54 = vld [vmem:[#allocation5 + $0x78] sm:$0xff]
    %55 = vmatprep.subr.mxu0 0.0
    %56 = vmatpush1.msra.mxu0 %v54
    %57 = vmatprep.subr.mxu0 0.0
    %58 = vmatpush1.msra.mxu0 %v53
    %59 = vmatprep.subr.mxu0 0.0
    %60 = vmatpush1.msra.mxu0 %v52
    %61 = vmatprep.subr.mxu0 0.0
    %62 = vmatpush1.msra.mxu0 %v51
    %63 = vmatprep.subr.mxu0 0.0
    %64 = vmatpush1.msra.mxu0 %v50
    %65 = vmatprep.subr.mxu0 0.0
    %66 = vmatpush1.msra.mxu0 %v49
    %67 = vmatprep.subr.mxu0 0.0
    %68 = vmatpush1.msra.mxu0 %v48
    %69 = vmatprep.subr.mxu0 0.0
    %70 = vmatpush1.msra.mxu0 %v47
    %71 = vmatprep.subr.mxu0 0.0
    %72 = vmatpush1.msra.mxu0 %v46
    %73 = vmatprep.subr.mxu0 0.0
    %74 = vmatpush1.msra.mxu0 %v45
    %75 = vmatprep.subr.mxu0 0.0
    %76 = vmatpush1.msra.mxu0 %v44
    %77 = vmatprep.subr.mxu0 0.0
    %78 = vmatpush1.msra.mxu0 %v43
    %79 = vmatprep.subr.mxu0 0.0
    %80 = vmatpush1.msra.mxu0 %v42
    %81 = vmatprep.subr.mxu0 0.0
    %82 = vmatpush1.msra.mxu0 %v41
    %83 = vmatprep.subr.mxu0 0.0
    %84 = vmatpush1.msra.mxu0 %v40
    %85 = vmatprep.subr.mxu0 0.0
    %86 = vmatpush1.msra.mxu0 %v39
    %87 = vmatprep.subr.mxu0 0.0
    %88 = vmatpush2.msra.mxu0 0.0
    %89 = vmatprep.subr.mxu0 0.0
    %90 = vmatpush2.msra.mxu0 0.0
    %91 = vmatprep.subr.mxu0 0.0
    %92 = vmatpush2.msra.mxu0 0.0
    %93 = vmatprep.subr.mxu0 0.0
    %94 = vmatpush2.msra.mxu0 0.0
    %95 = vmatprep.subr.mxu0 0.0
    %96 = vmatpush2.msra.mxu0 0.0
    %97 = vmatprep.subr.mxu0 0.0
    %98 = vmatpush2.msra.mxu0 0.0
    %99 = vmatprep.subr.mxu0 0.0
    %100 = vmatpush2.msra.mxu0 0.0
    %101 = vmatprep.subr.mxu0 0.0
    %102 = vmatpush2.msra.mxu0 0.0
    %103 = vmatprep.subr.mxu0 0.0
    %104 = vmatpush2.msra.mxu0 0.0
    %105 = vmatprep.subr.mxu0 0.0
    %106 = vmatpush2.msra.mxu0 0.0
    %107 = vmatprep.subr.mxu0 0.0
    %108 = vmatpush2.msra.mxu0 0.0
    %109 = vmatprep.subr.mxu0 0.0
    %110 = vmatpush2.msra.mxu0 0.0
    %111 = vmatprep.subr.mxu0 0.0
    %112 = vmatpush2.msra.mxu0 0.0
    %113 = vmatprep.subr.mxu0 0.0
    %114 = vmatpush2.msra.mxu0 0.0
    %115 = vmatprep.subr.mxu0 0.0
    %116 = vmatpush2.msra.mxu0 0.0
    %117 = vmatprep.subr.mxu0 0.0
    %118 = vmatpush2.msra.mxu0 0.0
    %119 = vmatprep.mubr.f32.mxu0 0.0
    %120 = vmatmul.mubr.f32.gmra.mxu0 %v38
    %v121 = vpop.f32.mrf.mxu0
    %v122 = vadd.f32 0.0, %v121
    %v123 = vpop.f32.mrf.mxu0
    %124 = vdwg.mxu0
    %125 = vst [vmem:[#allocation7] sm:$0xff] %v122
    // Predicated region
    $region18: #{tpu_custom_call.1} parent=1 // pred_check
      _
    $region19: #{tpu_custom_call.1} parent=1 // pred_check_branch
      %127 = sbr.rel (0) target = $region21
    $region20: #{tpu_custom_call.1} parent=1 // pred_region
      %s129 = ssub.s32 128, 128
      %130 = vsyncadd [#allocation4], %s129
      %s132 = sshll.u32 [#allocation7], 4
      %s133 = int_to_ptr.vmem [resolvable:$true] %s132
      %135 = dma.vmem_to_hbm [thread:$0]  %s133, 128, %s2, [#allocation4]
    $region21: #{tpu_custom_call.1} parent=1 // pred_fallthru
      _
    // Predicated region
    $region22: #{tpu_custom_call.1} parent=1 // pred_check
      _
    $region23: #{tpu_custom_call.1} parent=1 // pred_check_branch
      %137 = sbr.rel (0) target = $region25
    $region24: #{tpu_custom_call.1} parent=1 // pred_region
      %138 = dma.done [#allocation4], 128
    $region25: #{tpu_custom_call.1} parent=1 // pred_fallthru
      _
    %139 = vsyncpa [#allocation3], 1
    %140 = vsyncpa [#allocation6], 1
    %141 = vsyncpa [#allocation4], 1

// kernel: tpu_custom_call.1
$region0: #{tpu_custom_call.1}
  #allocation0 [shape = 'u32[]', space=smem, size = 0x4, offset = 0x4, fixed_abs, tag = 'smem constant byte address 0x4 - core index']
  #allocation1 [shape = 'u32[144,128]{1,0:T(1,128)}', space=vmem, size = 0x12000, scoped, tag = 'internal scratch']
  %s0 = inlined_call_operand.hbm [shape: f32[8,128], index: 0, kind: input, shape index: {}]
  %s1 = inlined_call_operand.hbm [shape: f32[128,128], index: 1, kind: input, shape index: {}]
  %s2 = inlined_call_operand.hbm [shape: f32[8,128], index: 2, kind: output, shape index: {}]
  %s3 = sld [smem:[#allocation0]]
  $region26: #{tpu_custom_call.1} parent=0
    _
  %s5 = ssub.s32 1, %s3
  %s6 = scalar_select 0, %s5, %s3
  $region1: #{tpu_custom_call.1} parent=0
    #allocation2 [shape = 'u8[4096]{0}', space=vmem, size = 0x1000, scoped, tag = 'input window, operand 0, single buffered']
    #allocation3 [shape = 's32[1]{0}', space=sflag, size = 0x4, scoped, tag = 'scoped memory for tpu_custom_call.1']
    #allocation4 [shape = 's32[1]{0}', space=sflag, size = 0x4, scoped, tag = 'scoped memory for tpu_custom_call.1']
    #allocation5 [shape = 'u8[65536]{0}', space=vmem, size = 0x10000, scoped, tag = 'input window, operand 1, single buffered']
    #allocation6 [shape = 's32[1]{0}', space=sflag, size = 0x4, scoped, tag = 'scoped memory for tpu_custom_call.1']
    #allocation7 [shape = 'u8[4096]{0}', space=vmem, size = 0x1000, scoped, tag = 'output window, operand 0, single buffered']
    %7 = vsyncpa [#allocation3], 0
    %8 = vsyncpa [#allocation6], 0
    %9 = vsyncpa [#allocation4], 0
    // Predicated region
    $region2: #{tpu_custom_call.1} parent=1 // pred_check
      _
    $region3: #{tpu_custom_call.1} parent=1 // pred_check_branch
      %11 = sbr.rel (0) target = $region5
    $region4: #{tpu_custom_call.1} parent=1 // pred_region
      %s13 = ssub.s32 128, 128
      %14 = vsyncadd [#allocation3], %s13
      %s16 = sshll.u32 [#allocation2], 4
      %s17 = int_to_ptr.vmem [resolvable:$true] %s16
      %19 = dma.hbm_to_vmem [thread:$0]  %s0, 128, %s17, [#allocation3]
    $region5: #{tpu_custom_call.1} parent=1 // pred_fallthru
      _
    // Predicated region
    $region6: #{tpu_custom_call.1} parent=1 // pred_check
      _
    $region7: #{tpu_custom_call.1} parent=1 // pred_check_branch
      %21 = sbr.rel (0) target = $region9
    $region8: #{tpu_custom_call.1} parent=1 // pred_region
      %s23 = ssub.s32 2048, 2048
      %24 = vsyncadd [#allocation6], %s23
      %s25 = sshll.u32 [#allocation5], 4
      %s26 = int_to_ptr.vmem [resolvable:$true] %s25
      %31 = dma.hbm_to_vmem [thread:$0]  %s1, 2048, %s26, [#allocation6], 128, 128, 8
    $region9: #{tpu_custom_call.1} parent=1 // pred_fallthru
      _
    // Predicated region
    $region10: #{tpu_custom_call.1} parent=1 // pred_check
      _
    $region11: #{tpu_custom_call.1} parent=1 // pred_check_branch
      %33 = sbr.rel (0) target = $region13
    $region12: #{tpu_custom_call.1} parent=1 // pred_region
      %34 = dma.done [#allocation3], 128
    $region13: #{tpu_custom_call.1} parent=1 // pred_fallthru
      _
    // Predicated region
    $region14: #{tpu_custom_call.1} parent=1 // pred_check
      _
    $region15: #{tpu_custom_call.1} parent=1 // pred_check_branch
      %36 = sbr.rel (0) target = $region17
    $region16: #{tpu_custom_call.1} parent=1 // pred_region
      %37 = dma.done [#allocation6], 2048
    $region17: #{tpu_custom_call.1} parent=1 // pred_fallthru
      _
    %v38 = vld [vmem:[#allocation2] sm:$0xff]
    %v39 = vld [vmem:[#allocation5] sm:$0xff]
    %v40 = vld [vmem:[#allocation5 + $0x8] sm:$0xff]
    %v41 = vld [vmem:[#allocation5 + $0x10] sm:$0xff]
    %v42 = vld [vmem:[#allocation5 + $0x18] sm:$0xff]
    %v43 = vld [vmem:[#allocation5 + $0x20] sm:$0xff]
    %v44 = vld [vmem:[#allocation5 + $0x28] sm:$0xff]
    %v45 = vld [vmem:[#allocation5 + $0x30] sm:$0xff]
    %v46 = vld [vmem:[#allocation5 + $0x38] sm:$0xff]
    %v47 = vld [vmem:[#allocation5 + $0x40] sm:$0xff]
    %v48 = vld [vmem:[#allocation5 + $0x48] sm:$0xff]
    %v49 = vld [vmem:[#allocation5 + $0x50] sm:$0xff]
    %v50 = vld [vmem:[#allocation5 + $0x58] sm:$0xff]
    %v51 = vld [vmem:[#allocation5 + $0x60] sm:$0xff]
    %v52 = vld [vmem:[#allocation5 + $0x68] sm:$0xff]
    %v53 = vld [vmem:[#allocation5 + $0x70] sm:$0xff]
    %v54 = vld [vmem:[#allocation5 + $0x78] sm:$0xff]
    %55 = vmatprep.subr.mxu0 0.0
    %56 = vmatpush1.msra.mxu0 %v54
    %57 = vmatprep.subr.mxu0 0.0
    %58 = vmatpush1.msra.mxu0 %v53
    %59 = vmatprep.subr.mxu0 0.0
    %60 = vmatpush1.msra.mxu0 %v52
    %61 = vmatprep.subr.mxu0 0.0
    %62 = vmatpush1.msra.mxu0 %v51
    %63 = vmatprep.subr.mxu0 0.0
    %64 = vmatpush1.msra.mxu0 %v50
    %65 = vmatprep.subr.mxu0 0.0
    %66 = vmatpush1.msra.mxu0 %v49
    %67 = vmatprep.subr.mxu0 0.0
    %68 = vmatpush1.msra.mxu0 %v48
    %69 = vmatprep.subr.mxu0 0.0
    %70 = vmatpush1.msra.mxu0 %v47
    %71 = vmatprep.subr.mxu0 0.0
    %72 = vmatpush1.msra.mxu0 %v46
    %73 = vmatprep.subr.mxu0 0.0
    %74 = vmatpush1.msra.mxu0 %v45
    %75 = vmatprep.subr.mxu0 0.0
    %76 = vmatpush1.msra.mxu0 %v44
    %77 = vmatprep.subr.mxu0 0.0
    %78 = vmatpush1.msra.mxu0 %v43
    %79 = vmatprep.subr.mxu0 0.0
    %80 = vmatpush1.msra.mxu0 %v42
    %81 = vmatprep.subr.mxu0 0.0
    %82 = vmatpush1.msra.mxu0 %v41
    %83 = vmatprep.subr.mxu0 0.0
    %84 = vmatpush1.msra.mxu0 %v40
    %85 = vmatprep.subr.mxu0 0.0
    %86 = vmatpush1.msra.mxu0 %v39
    %87 = vmatprep.subr.mxu0 0.0
    %88 = vmatpush2.msra.mxu0 0.0
    %89 = vmatprep.subr.mxu0 0.0
    %90 = vmatpush2.msra.mxu0 0.0
    %91 = vmatprep.subr.mxu0 0.0
    %92 = vmatpush2.msra.mxu0 0.0
    %93 = vmatprep.subr.mxu0 0.0
    %94 = vmatpush2.msra.mxu0 0.0
    %95 = vmatprep.subr.mxu0 0.0
    %96 = vmatpush2.msra.mxu0 0.0
    %97 = vmatprep.subr.mxu0 0.0
    %98 = vmatpush2.msra.mxu0 0.0
    %99 = vmatprep.subr.mxu0 0.0
    %100 = vmatpush2.msra.mxu0 0.0
    %101 = vmatprep.subr.mxu0 0.0
    %102 = vmatpush2.msra.mxu0 0.0
    %103 = vmatprep.subr.mxu0 0.0
    %104 = vmatpush2.msra.mxu0 0.0
    %105 = vmatprep.subr.mxu0 0.0
    %106 = vmatpush2.msra.mxu0 0.0
    %107 = vmatprep.subr.mxu0 0.0
    %108 = vmatpush2.msra.mxu0 0.0
    %109 = vmatprep.subr.mxu0 0.0
    %110 = vmatpush2.msra.mxu0 0.0
    %111 = vmatprep.subr.mxu0 0.0
    %112 = vmatpush2.msra.mxu0 0.0
    %113 = vmatprep.subr.mxu0 0.0
    %114 = vmatpush2.msra.mxu0 0.0
    %115 = vmatprep.subr.mxu0 0.0
    %116 = vmatpush2.msra.mxu0 0.0
    %117 = vmatprep.subr.mxu0 0.0
    %118 = vmatpush2.msra.mxu0 0.0
    %119 = vmatprep.mubr.f32.mxu0 0.0
    %120 = vmatmul.mubr.f32.gmra.mxu0 %v38
    %v121 = vpop.f32.mrf.mxu0
    %v122 = vadd.f32 0.0, %v121
    %v123 = vpop.f32.mrf.mxu0
    %124 = vdwg.mxu0
    %125 = vst [vmem:[#allocation7] sm:$0xff] %v122
    // Predicated region
    $region18: #{tpu_custom_call.1} parent=1 // pred_check
      _
    $region19: #{tpu_custom_call.1} parent=1 // pred_check_branch
      %127 = sbr.rel (0) target = $region21
    $region20: #{tpu_custom_call.1} parent=1 // pred_region
      %s129 = ssub.s32 128, 128
      %130 = vsyncadd [#allocation4], %s129
      %s132 = sshll.u32 [#allocation7], 4
      %s133 = int_to_ptr.vmem [resolvable:$true] %s132
      %135 = dma.vmem_to_hbm [thread:$0]  %s133, 128, %s2, [#allocation4]
    $region21: #{tpu_custom_call.1} parent=1 // pred_fallthru
      _
    // Predicated region
    $region22: #{tpu_custom_call.1} parent=1 // pred_check
      _
    $region23: #{tpu_custom_call.1} parent=1 // pred_check_branch
      %137 = sbr.rel (0) target = $region25
    $region24: #{tpu_custom_call.1} parent=1 // pred_region
      %138 = dma.done [#allocation4], 128
    $region25: #{tpu_custom_call.1} parent=1 // pred_fallthru
      _
    %139 = vsyncpa [#allocation3], 1
    %140 = vsyncpa [#allocation6], 1
    %141 = vsyncpa [#allocation4], 1

</llo_original>
